<compile_context>
chip_gen: v7x
topology: tpu7x:2x2x1
jax: 0.10.0
libtpu: 0.0.40
codegen_flags: <defaults>
</compile_context>

<pallas_src>
import functools

import numpy as np
import jax
import jax.numpy as jnp
from jax.experimental import pallas as pl
from jax.experimental.pallas import tpu as pltpu

_LANE = 128
_S_TILE_MAX = 64 * 1024      # voxels per spatial tile (multiple of 128)


def _round_up(x, m):
    return ((x + m - 1) // m) * m


# ----------------------------------------------------------------------------
# Segmentation statistics kernel (shared by Tversky and Unified Focal losses)
# ----------------------------------------------------------------------------
def _seg_stats_kernel(logits_ref, target_ref, stats_ref, *, n_classes,
                      with_focal, gamma, needs_mask):
    """Accumulates per-(batch, class) partial statistics for one spatial tile.

    stats rows (lane-wise partial sums; the 128-wide lane reduce happens in the
    wrapper on tiny arrays):
      0: sum_S p_c * onehot_c          (tp / intersection)
      1: sum_S p_c                     (masked to valid voxels)
      2: sum_S onehot_c                (n_c)
      3: sum_S mean_c((1-p_t)^g) * CE  (focal only; stored in sublane 0)
    """
    s = pl.program_id(1)

    @pl.when(s == 0)
    def _init():
        stats_ref[...] = jnp.zeros_like(stats_ref)

    C = n_classes
    t = target_ref[0].astype(jnp.int32)                       # (R, 128)

    # Per-class logit slabs, cast to f32 in-kernel (inputs may be bf16).
    xs = [logits_ref[0, c].astype(jnp.float32) for c in range(C)]

    # Numerically stable channel softmax; the class-dim reductions are an
    # unrolled chain of element-wise VPU ops over full-density (R, 128) tiles.
    m = xs[0]
    for c in range(1, C):
        m = jnp.maximum(m, xs[c])
    es = [jnp.exp(x_c - m) for x_c in xs]
    se = es[0]
    for c in range(1, C):
        se = se + es[c]
    inv_se = pl.reciprocal(se)                                # EUP, frees VALU

    if needs_mask:
        valid = (t < C).astype(jnp.float32)                   # padded voxels = C

    if with_focal:
        p_true = jnp.zeros_like(m)
        x_true = jnp.zeros_like(m)
        fw_acc = jnp.zeros_like(m)

    for c in range(C):
        p_c = es[c] * inv_se                                  # (R, 128)
        oh_c = (t == c).astype(jnp.float32)                   # (R, 128)
        po_c = p_c * oh_c
        p_valid = p_c * valid if needs_mask else p_c

        # Lane-wise partial sums (per-class sublane reduce), accumulated into the
        # lane-dense per-batch stats block resident across the spatial grid axis.
        stats_ref[0, 0, pl.ds(c, 1), :] += jnp.sum(po_c, axis=0, keepdims=True)
        stats_ref[0, 1, pl.ds(c, 1), :] += jnp.sum(p_valid, axis=0, keepdims=True)
        stats_ref[0, 2, pl.ds(c, 1), :] += jnp.sum(oh_c, axis=0, keepdims=True)

        if with_focal:
            p_true = p_true + po_c
            x_true = x_true + xs[c] * oh_c
            if gamma == 2.0:
                fw_acc = fw_acc + p_c * p_c                   # sum_c p_c^2
            else:
                fw_acc = fw_acc + jnp.where(oh_c > 0.0, 1.0 - p_c, p_c) ** gamma

    if with_focal:
        ce = (m + jnp.log(se)) - x_true                       # per-voxel CE
        if gamma == 2.0:
            # mean_c (1 - p_t_c)^2 == (1 - 2*p_true + sum_c p_c^2) / C   (exact)
            fw_mean = (1.0 - 2.0 * p_true + fw_acc) * (1.0 / C)
        else:
            fw_mean = fw_acc * (1.0 / C)
        fce = fw_mean * ce
        if needs_mask:
            fce = fce * valid
        stats_ref[0, 3, pl.ds(0, 1), :] += jnp.sum(fce, axis=0, keepdims=True)


def _seg_partial_stats(seg_pred, seg_target, *, with_focal, gamma=2.0,
                       s_tile_max=_S_TILE_MAX):
    """Runs the stats kernel; returns (stats[B, n_stats, C, 128], n_voxels)."""
    B, C = int(seg_pred.shape[0]), int(seg_pred.shape[1])
    S = int(np.prod(seg_pred.shape[2:]))

    s_tile = min(int(s_tile_max), _round_up(S, _LANE))
    s_padded = _round_up(S, s_tile)
    pad = s_padded - S
    needs_mask = pad > 0

    logits = seg_pred.reshape(B, C, S)          # native dtype; no astype here
    target = seg_target.reshape(B, S)
    if needs_mask:
        # Pad targets with the out-of-range label C so padded voxels never hit a
        # one-hot; the kernel additionally masks sum_p / focal-CE with (t < C).
        logits = jnp.pad(logits, ((0, 0), (0, 0), (0, pad)))
        target = jnp.pad(target, ((0, 0), (0, pad)), constant_values=C)

    r_total = s_padded // _LANE
    r_tile = s_tile // _LANE
    n_s_tiles = s_padded // s_tile
    n_stats = 4 if with_focal else 3

    logits = logits.reshape(B, C, r_total, _LANE)
    target = target.reshape(B, r_total, _LANE)

    kernel = functools.partial(
        _seg_stats_kernel, n_classes=C, with_focal=with_focal,
        gamma=float(gamma), needs_mask=needs_mask)

    stats = pl.pallas_call(
        kernel,
        out_shape=jax.ShapeDtypeStruct((B, n_stats, C, _LANE), jnp.float32),
        grid_spec=pltpu.PrefetchScalarGridSpec(
            num_scalar_prefetch=0,
            grid=(B, n_s_tiles),
            in_specs=[
                pl.BlockSpec((1, C, r_tile, _LANE), lambda b, s: (b, 0, s, 0)),
                pl.BlockSpec((1, r_tile, _LANE), lambda b, s: (b, s, 0)),
            ],
            out_specs=pl.BlockSpec((1, n_stats, C, _LANE),
                                   lambda b, s: (b, 0, 0, 0)),
        ),
        compiler_params=pltpu.CompilerParams(
            dimension_semantics=("parallel", "arbitrary")),
    )(logits, target)
    return stats, S


# ----------------------------------------------------------------------------
# Loss finalization (tiny plain-JAX reductions over the kernel partials)
# ----------------------------------------------------------------------------
def tversky_loss(seg_pred, seg_target, *, alpha=0.7, beta=0.3, smooth=1e-5):
    stats, _ = _seg_partial_stats(seg_pred, seg_target, with_focal=False)
    s = jnp.sum(stats, axis=-1)                  # (B, 3, C)
    tp, sum_p, n_c = s[:, 0], s[:, 1], s[:, 2]
    fn = n_c - tp
    fp = sum_p - tp
    tversky = (tp + smooth) / (tp + alpha * fn + beta * fp + smooth)
    return 1.0 - jnp.mean(tversky)


def unified_focal_loss(seg_pred, seg_target, *, alpha=0.25, gamma=2.0,
                       smooth=1e-5):
    stats, S = _seg_partial_stats(seg_pred, seg_target, with_focal=True,
                                  gamma=gamma)
    B = stats.shape[0]
    s = jnp.sum(stats, axis=-1)                  # (B, 4, C)
    inter, sum_p, n_c = s[:, 0], s[:, 1], s[:, 2]
    dice = (2.0 * inter + smooth) / (sum_p + n_c + smooth)
    dice_loss = 1.0 - jnp.mean(dice)
    fce_mean = jnp.sum(stats[:, 3, 0, :]) / float(B * S)
    return alpha * fce_mean + (1.0 - alpha) * dice_loss


def cls_cross_entropy(cls_pred, cls_target):
    # Tiny (B, K) op: kept in plain XLA per the perf review (a dedicated Pallas
    # kernel would be pure launch overhead with masked lane-width-K load/stores).
    x = jnp.clip(cls_pred.astype(jnp.float32), -10.0, 10.0)
    logp = jax.nn.log_softmax(x, axis=-1)
    nll = -jnp.take_along_axis(logp, cls_target.astype(jnp.int32)[:, None],
                               axis=-1)
    return jnp.mean(nll)


# ----------------------------------------------------------------------------
# MultiTaskLoss wrapper
# ----------------------------------------------------------------------------
@functools.partial(jax.jit,
                   static_argnames=("loss_type", "seg_weight", "cls_weight"))
def _multitask_forward(seg_pred, seg_target, cls_pred, cls_target, *,
                       loss_type, seg_weight, cls_weight):
    if loss_type == "tversky":
        seg_loss = tversky_loss(seg_pred, seg_target)
    else:
        seg_loss = unified_focal_loss(seg_pred, seg_target)
    cls_loss = cls_cross_entropy(cls_pred, cls_target)
    total = seg_weight * seg_loss + cls_weight * cls_loss
    return {"loss": total,
            "segmentation_loss": seg_loss,
            "classification_loss": cls_loss}


class MultiTaskLoss:
    """Multi-task loss: segmentation (tversky / focal) + classification CE."""

    def __init__(self, seg_weight=1.0, cls_weight=0.5, loss_type="tversky"):
        assert loss_type in ("tversky", "focal"), \
            "only 'tversky' and 'focal' are implemented"  # TODO(synk): 'dice_ce'
        self.seg_weight = float(seg_weight)
        self.cls_weight = float(cls_weight)
        self.loss_type = loss_type

    def __call__(self, seg_pred, seg_target, cls_pred, cls_target):
        return _multitask_forward(seg_pred, seg_target, cls_pred, cls_target,
                                  loss_type=self.loss_type,
                                  seg_weight=self.seg_weight,
                                  cls_weight=self.cls_weight)


# ----------------------------------------------------------------------------
# pure-JAX reference (mirrors the PyTorch semantics)
# ----------------------------------------------------------------------------
def _reference(loss_type, seg_pred, seg_target, cls_pred, cls_target,
               seg_weight=1.0, cls_weight=0.5):
    C = seg_pred.shape[1]
    p = jax.nn.softmax(seg_pred.astype(jnp.float32), axis=1)
    onehot = jax.nn.one_hot(seg_target, C, axis=1, dtype=jnp.float32)
    if loss_type == "tversky":
        tp = jnp.sum(p * onehot, axis=(2, 3, 4))
        fn = jnp.sum((1 - p) * onehot, axis=(2, 3, 4))
        fp = jnp.sum(p * (1 - onehot), axis=(2, 3, 4))
        tv = (tp + 1e-5) / (tp + 0.7 * fn + 0.3 * fp + 1e-5)
        seg_loss = 1.0 - tv.mean()
    else:
        p_t = jnp.where(onehot == 1, p, 1 - p)
        fw = (1 - p_t) ** 2
        inter = jnp.sum(p * onehot, axis=(2, 3, 4))
        union = jnp.sum(p, axis=(2, 3, 4)) + jnp.sum(onehot, axis=(2, 3, 4))
        dice = (2 * inter + 1e-5) / (union + 1e-5)
        dice_loss = 1.0 - dice.mean()
        logp = jax.nn.log_softmax(seg_pred.astype(jnp.float32), axis=1)
        ce = -jnp.sum(onehot * logp, axis=1)
        fce = fw.mean(axis=1) * ce
        seg_loss = 0.25 * fce.mean() + 0.75 * dice_loss
    x = jnp.clip(cls_pred.astype(jnp.float32), -10.0, 10.0)
    logp = jax.nn.log_softmax(x, axis=1)
    cls_loss = -jnp.mean(logp[jnp.arange(cls_pred.shape[0]), cls_target])
    total = seg_weight * seg_loss + cls_weight * cls_loss
    return {"loss": total, "segmentation_loss": seg_loss,
            "classification_loss": cls_loss}


if __name__ == "__main__":
    key = jax.random.PRNGKey(0)
    cases = [
        dict(B=2, C=4, spatial=(4, 8, 8), K=3),    # S = 256 (lane aligned)
        dict(B=2, C=3, spatial=(3, 5, 7), K=5),    # S = 105 (exercises pad/mask)
    ]
    for case in cases:
        B, C, K = case["B"], case["C"], case["K"]
        D, H, W = case["spatial"]
        k1, k2, k3, k4, key = jax.random.split(key, 5)
        seg_pred = jax.random.normal(k1, (B, C, D, H, W), jnp.float32)
        seg_target = jax.random.randint(k2, (B, D, H, W), 0, C, jnp.int32)
        cls_pred = 5.0 * jax.random.normal(k3, (B, K), jnp.float32)
        cls_target = jax.random.randint(k4, (B,), 0, K, jnp.int32)

        for lt in ("tversky", "focal"):
            loss_fn = MultiTaskLoss(seg_weight=1.0, cls_weight=0.5, loss_type=lt)
            out = loss_fn(seg_pred, seg_target, cls_pred, cls_target)
            out = {k: jax.block_until_ready(v) for k, v in out.items()}
            ref = _reference(lt, seg_pred, seg_target, cls_pred, cls_target)
            for name in ("loss", "segmentation_loss", "classification_loss"):
                np.testing.assert_allclose(float(out[name]), float(ref[name]),
                                           rtol=1e-4, atol=1e-5)

    print("KERNEL_OK")
</pallas_src>

<mosaic_0001>
module attributes {stable_mosaic.version = 11 : i64} {
  func.func @_seg_stats_kernel(%arg0: i32, %arg1: i32, %arg2: memref<1x4x2x128xf32, #tpu.memory_space<vmem>>, %arg3: memref<1x2x128xi32, #tpu.memory_space<vmem>>, %arg4: memref<1x3x4x128xf32, #tpu.memory_space<vmem>>) attributes {dimension_semantics = [#tpu.dimension_semantics<parallel>, #tpu.dimension_semantics<arbitrary>], iteration_bounds = array<i64: 2, 1>, scalar_prefetch = 0 : i64, scratch_operands = 0 : i64, tpu.core_type = #tpu.core_type<tc>, window_params = [{transform_indices = @transform_0, window_bounds = array<i64: 1, 4, 2, 128>}, {transform_indices = @transform_1, window_bounds = array<i64: 1, 2, 128>}, {transform_indices = @transform_2, window_bounds = array<i64: 1, 3, 4, 128>}]} {
    %c0_i32 = arith.constant 0 : i32
    %0 = arith.cmpi eq, %arg1, %c0_i32 : i32
    %1 = arith.extui %0 : i1 to i32
    %c0_i32_0 = arith.constant 0 : i32
    %2 = arith.cmpi ne, %1, %c0_i32_0 : i32
    scf.if %2 {
      %cst_124 = arith.constant 0.000000e+00 : f32
      %148 = vector.broadcast %cst_124 : f32 to vector<1x3x4x128xf32>
      %c0_125 = arith.constant 0 : index
      %c0_126 = arith.constant 0 : index
      %c0_127 = arith.constant 0 : index
      %c0_128 = arith.constant 0 : index
      %149 = vector.load %arg4[%c0_125, %c0_126, %c0_127, %c0_128] : memref<1x3x4x128xf32, #tpu.memory_space<vmem>>, vector<1x3x4x128xf32>
      tpu.vector_store %arg4[%c0_125, %c0_126, %c0_127, %c0_128], %148 {strides = array<i32>} : memref<1x3x4x128xf32, #tpu.memory_space<vmem>>, vector<1x3x4x128xf32>,
    } else {
    }
    %c0 = arith.constant 0 : index
    %c0_1 = arith.constant 0 : index
    %c0_2 = arith.constant 0 : index
    %3 = vector.load %arg3[%c0, %c0_1, %c0_2] : memref<1x2x128xi32, #tpu.memory_space<vmem>>, vector<1x2x128xi32>
    %4 = vector.shape_cast %3 : vector<1x2x128xi32> to vector<2x128xi32>
    %c0_3 = arith.constant 0 : index
    %c0_4 = arith.constant 0 : index
    %c0_5 = arith.constant 0 : index
    %c0_6 = arith.constant 0 : index
    %5 = vector.load %arg2[%c0_3, %c0_4, %c0_5, %c0_6] : memref<1x4x2x128xf32, #tpu.memory_space<vmem>>, vector<1x1x2x128xf32>
    %6 = vector.shape_cast %5 : vector<1x1x2x128xf32> to vector<2x128xf32>
    %c0_7 = arith.constant 0 : index
    %c1 = arith.constant 1 : index
    %c0_8 = arith.constant 0 : index
    %c0_9 = arith.constant 0 : index
    %7 = vector.load %arg2[%c0_7, %c1, %c0_8, %c0_9] : memref<1x4x2x128xf32, #tpu.memory_space<vmem>>, vector<1x1x2x128xf32>
    %8 = vector.shape_cast %7 : vector<1x1x2x128xf32> to vector<2x128xf32>
    %c0_10 = arith.constant 0 : index
    %c2 = arith.constant 2 : index
    %c0_11 = arith.constant 0 : index
    %c0_12 = arith.constant 0 : index
    %9 = vector.load %arg2[%c0_10, %c2, %c0_11, %c0_12] : memref<1x4x2x128xf32, #tpu.memory_space<vmem>>, vector<1x1x2x128xf32>
    %10 = vector.shape_cast %9 : vector<1x1x2x128xf32> to vector<2x128xf32>
    %c0_13 = arith.constant 0 : index
    %c3 = arith.constant 3 : index
    %c0_14 = arith.constant 0 : index
    %c0_15 = arith.constant 0 : index
    %11 = vector.load %arg2[%c0_13, %c3, %c0_14, %c0_15] : memref<1x4x2x128xf32, #tpu.memory_space<vmem>>, vector<1x1x2x128xf32>
    %12 = vector.shape_cast %11 : vector<1x1x2x128xf32> to vector<2x128xf32>
    %13 = arith.maximumf %6, %8 : vector<2x128xf32>
    %14 = arith.maximumf %13, %10 : vector<2x128xf32>
    %15 = arith.maximumf %14, %12 : vector<2x128xf32>
    %16 = arith.subf %6, %15 : vector<2x128xf32>
    %17 = math.exp %16 : vector<2x128xf32>
    %18 = arith.subf %8, %15 : vector<2x128xf32>
    %19 = math.exp %18 : vector<2x128xf32>
    %20 = arith.subf %10, %15 : vector<2x128xf32>
    %21 = math.exp %20 : vector<2x128xf32>
    %22 = arith.subf %12, %15 : vector<2x128xf32>
    %23 = math.exp %22 : vector<2x128xf32>
    %24 = arith.addf %17, %19 : vector<2x128xf32>
    %25 = arith.addf %24, %21 : vector<2x128xf32>
    %26 = arith.addf %25, %23 : vector<2x128xf32>
    %27 = tpu.reciprocal %26 : vector<2x128xf32> -> vector<2x128xf32>
    %28 = arith.mulf %17, %27 : vector<2x128xf32>
    %c0_i32_16 = arith.constant 0 : i32
    %29 = vector.broadcast %c0_i32_16 : i32 to vector<2x128xi32>
    %30 = arith.cmpi eq, %4, %29 : vector<2x128xi32>
    %31 = arith.extui %30 : vector<2x128xi1> to vector<2x128xi32>
    %32 = arith.sitofp %31 : vector<2x128xi32> to vector<2x128xf32>
    %33 = arith.mulf %28, %32 : vector<2x128xf32>
    %c0_17 = arith.constant 0 : index
    %c0_18 = arith.constant 0 : index
    %c0_19 = arith.constant 0 : index
    %c0_20 = arith.constant 0 : index
    %34 = vector.load %arg4[%c0_17, %c0_18, %c0_19, %c0_20] : memref<1x3x4x128xf32, #tpu.memory_space<vmem>>, vector<1x1x1x128xf32>
    %35 = vector.shape_cast %34 : vector<1x1x1x128xf32> to vector<1x128xf32>
    %cst = arith.constant dense<0.000000e+00> : vector<128xf32>
    %36 = vector.multi_reduction <add>, %33, %cst [0] : vector<2x128xf32> to vector<128xf32>
    %37 = vector.shape_cast %36 : vector<128xf32> to vector<1x128xf32>
    %38 = arith.addf %35, %37 : vector<1x128xf32>
    %c0_21 = arith.constant 0 : index
    %c0_22 = arith.constant 0 : index
    %c0_23 = arith.constant 0 : index
    %c0_24 = arith.constant 0 : index
    %39 = vector.load %arg4[%c0_21, %c0_22, %c0_23, %c0_24] : memref<1x3x4x128xf32, #tpu.memory_space<vmem>>, vector<1x1x1x128xf32>
    %40 = vector.shape_cast %39 : vector<1x1x1x128xf32> to vector<1x128xf32>
    %41 = vector.shape_cast %38 : vector<1x128xf32> to vector<1x1x1x128xf32>
    tpu.vector_store %arg4[%c0_21, %c0_22, %c0_23, %c0_24], %41 {strides = array<i32>} : memref<1x3x4x128xf32, #tpu.memory_space<vmem>>, vector<1x1x1x128xf32>,
    %c0_25 = arith.constant 0 : index
    %c1_26 = arith.constant 1 : index
    %c0_27 = arith.constant 0 : index
    %c0_28 = arith.constant 0 : index
    %42 = vector.load %arg4[%c0_25, %c1_26, %c0_27, %c0_28] : memref<1x3x4x128xf32, #tpu.memory_space<vmem>>, vector<1x1x1x128xf32>
    %43 = vector.shape_cast %42 : vector<1x1x1x128xf32> to vector<1x128xf32>
    %cst_29 = arith.constant dense<0.000000e+00> : vector<128xf32>
    %44 = vector.multi_reduction <add>, %28, %cst_29 [0] : vector<2x128xf32> to vector<128xf32>
    %45 = vector.shape_cast %44 : vector<128xf32> to vector<1x128xf32>
    %46 = arith.addf %43, %45 : vector<1x128xf32>
    %c0_30 = arith.constant 0 : index
    %c1_31 = arith.constant 1 : index
    %c0_32 = arith.constant 0 : index
    %c0_33 = arith.constant 0 : index
    %47 = vector.load %arg4[%c0_30, %c1_31, %c0_32, %c0_33] : memref<1x3x4x128xf32, #tpu.memory_space<vmem>>, vector<1x1x1x128xf32>
    %48 = vector.shape_cast %47 : vector<1x1x1x128xf32> to vector<1x128xf32>
    %49 = vector.shape_cast %46 : vector<1x128xf32> to vector<1x1x1x128xf32>
    tpu.vector_store %arg4[%c0_30, %c1_31, %c0_32, %c0_33], %49 {strides = array<i32>} : memref<1x3x4x128xf32, #tpu.memory_space<vmem>>, vector<1x1x1x128xf32>,
    %c0_34 = arith.constant 0 : index
    %c2_35 = arith.constant 2 : index
    %c0_36 = arith.constant 0 : index
    %c0_37 = arith.constant 0 : index
    %50 = vector.load %arg4[%c0_34, %c2_35, %c0_36, %c0_37] : memref<1x3x4x128xf32, #tpu.memory_space<vmem>>, vector<1x1x1x128xf32>
    %51 = vector.shape_cast %50 : vector<1x1x1x128xf32> to vector<1x128xf32>
    %cst_38 = arith.constant dense<0.000000e+00> : vector<128xf32>
    %52 = vector.multi_reduction <add>, %32, %cst_38 [0] : vector<2x128xf32> to vector<128xf32>
    %53 = vector.shape_cast %52 : vector<128xf32> to vector<1x128xf32>
    %54 = arith.addf %51, %53 : vector<1x128xf32>
    %c0_39 = arith.constant 0 : index
    %c2_40 = arith.constant 2 : index
    %c0_41 = arith.constant 0 : index
    %c0_42 = arith.constant 0 : index
    %55 = vector.load %arg4[%c0_39, %c2_40, %c0_41, %c0_42] : memref<1x3x4x128xf32, #tpu.memory_space<vmem>>, vector<1x1x1x128xf32>
    %56 = vector.shape_cast %55 : vector<1x1x1x128xf32> to vector<1x128xf32>
    %57 = vector.shape_cast %54 : vector<1x128xf32> to vector<1x1x1x128xf32>
    tpu.vector_store %arg4[%c0_39, %c2_40, %c0_41, %c0_42], %57 {strides = array<i32>} : memref<1x3x4x128xf32, #tpu.memory_space<vmem>>, vector<1x1x1x128xf32>,
    %58 = arith.mulf %19, %27 : vector<2x128xf32>
    %c1_i32 = arith.constant 1 : i32
    %59 = vector.broadcast %c1_i32 : i32 to vector<2x128xi32>
    %60 = arith.cmpi eq, %4, %59 : vector<2x128xi32>
    %61 = arith.extui %60 : vector<2x128xi1> to vector<2x128xi32>
    %62 = arith.sitofp %61 : vector<2x128xi32> to vector<2x128xf32>
    %63 = arith.mulf %58, %62 : vector<2x128xf32>
    %c0_43 = arith.constant 0 : index
    %c0_44 = arith.constant 0 : index
    %c1_45 = arith.constant 1 : index
    %c0_46 = arith.constant 0 : index
    %64 = vector.load %arg4[%c0_43, %c0_44, %c1_45, %c0_46] : memref<1x3x4x128xf32, #tpu.memory_space<vmem>>, vector<1x1x1x128xf32>
    %65 = vector.shape_cast %64 : vector<1x1x1x128xf32> to vector<1x128xf32>
    %cst_47 = arith.constant dense<0.000000e+00> : vector<128xf32>
    %66 = vector.multi_reduction <add>, %63, %cst_47 [0] : vector<2x128xf32> to vector<128xf32>
    %67 = vector.shape_cast %66 : vector<128xf32> to vector<1x128xf32>
    %68 = arith.addf %65, %67 : vector<1x128xf32>
    %c0_48 = arith.constant 0 : index
    %c0_49 = arith.constant 0 : index
    %c1_50 = arith.constant 1 : index
    %c0_51 = arith.constant 0 : index
    %69 = vector.load %arg4[%c0_48, %c0_49, %c1_50, %c0_51] : memref<1x3x4x128xf32, #tpu.memory_space<vmem>>, vector<1x1x1x128xf32>
    %70 = vector.shape_cast %69 : vector<1x1x1x128xf32> to vector<1x128xf32>
    %71 = vector.shape_cast %68 : vector<1x128xf32> to vector<1x1x1x128xf32>
    tpu.vector_store %arg4[%c0_48, %c0_49, %c1_50, %c0_51], %71 {strides = array<i32>} : memref<1x3x4x128xf32, #tpu.memory_space<vmem>>, vector<1x1x1x128xf32>,
    %c0_52 = arith.constant 0 : index
    %c1_53 = arith.constant 1 : index
    %c1_54 = arith.constant 1 : index
    %c0_55 = arith.constant 0 : index
    %72 = vector.load %arg4[%c0_52, %c1_53, %c1_54, %c0_55] : memref<1x3x4x128xf32, #tpu.memory_space<vmem>>, vector<1x1x1x128xf32>
    %73 = vector.shape_cast %72 : vector<1x1x1x128xf32> to vector<1x128xf32>
    %cst_56 = arith.constant dense<0.000000e+00> : vector<128xf32>
    %74 = vector.multi_reduction <add>, %58, %cst_56 [0] : vector<2x128xf32> to vector<128xf32>
    %75 = vector.shape_cast %74 : vector<128xf32> to vector<1x128xf32>
    %76 = arith.addf %73, %75 : vector<1x128xf32>
    %c0_57 = arith.constant 0 : index
    %c1_58 = arith.constant 1 : index
    %c1_59 = arith.constant 1 : index
    %c0_60 = arith.constant 0 : index
    %77 = vector.load %arg4[%c0_57, %c1_58, %c1_59, %c0_60] : memref<1x3x4x128xf32, #tpu.memory_space<vmem>>, vector<1x1x1x128xf32>
    %78 = vector.shape_cast %77 : vector<1x1x1x128xf32> to vector<1x128xf32>
    %79 = vector.shape_cast %76 : vector<1x128xf32> to vector<1x1x1x128xf32>
    tpu.vector_store %arg4[%c0_57, %c1_58, %c1_59, %c0_60], %79 {strides = array<i32>} : memref<1x3x4x128xf32, #tpu.memory_space<vmem>>, vector<1x1x1x128xf32>,
    %c0_61 = arith.constant 0 : index
    %c2_62 = arith.constant 2 : index
    %c1_63 = arith.constant 1 : index
    %c0_64 = arith.constant 0 : index
    %80 = vector.load %arg4[%c0_61, %c2_62, %c1_63, %c0_64] : memref<1x3x4x128xf32, #tpu.memory_space<vmem>>, vector<1x1x1x128xf32>
    %81 = vector.shape_cast %80 : vector<1x1x1x128xf32> to vector<1x128xf32>
    %cst_65 = arith.constant dense<0.000000e+00> : vector<128xf32>
    %82 = vector.multi_reduction <add>, %62, %cst_65 [0] : vector<2x128xf32> to vector<128xf32>
    %83 = vector.shape_cast %82 : vector<128xf32> to vector<1x128xf32>
    %84 = arith.addf %81, %83 : vector<1x128xf32>
    %c0_66 = arith.constant 0 : index
    %c2_67 = arith.constant 2 : index
    %c1_68 = arith.constant 1 : index
    %c0_69 = arith.constant 0 : index
    %85 = vector.load %arg4[%c0_66, %c2_67, %c1_68, %c0_69] : memref<1x3x4x128xf32, #tpu.memory_space<vmem>>, vector<1x1x1x128xf32>
    %86 = vector.shape_cast %85 : vector<1x1x1x128xf32> to vector<1x128xf32>
    %87 = vector.shape_cast %84 : vector<1x128xf32> to vector<1x1x1x128xf32>
    tpu.vector_store %arg4[%c0_66, %c2_67, %c1_68, %c0_69], %87 {strides = array<i32>} : memref<1x3x4x128xf32, #tpu.memory_space<vmem>>, vector<1x1x1x128xf32>,
    %88 = arith.mulf %21, %27 : vector<2x128xf32>
    %c2_i32 = arith.constant 2 : i32
    %89 = vector.broadcast %c2_i32 : i32 to vector<2x128xi32>
    %90 = arith.cmpi eq, %4, %89 : vector<2x128xi32>
    %91 = arith.extui %90 : vector<2x128xi1> to vector<2x128xi32>
    %92 = arith.sitofp %91 : vector<2x128xi32> to vector<2x128xf32>
    %93 = arith.mulf %88, %92 : vector<2x128xf32>
    %c0_70 = arith.constant 0 : index
    %c0_71 = arith.constant 0 : index
    %c2_72 = arith.constant 2 : index
    %c0_73 = arith.constant 0 : index
    %94 = vector.load %arg4[%c0_70, %c0_71, %c2_72, %c0_73] : memref<1x3x4x128xf32, #tpu.memory_space<vmem>>, vector<1x1x1x128xf32>
    %95 = vector.shape_cast %94 : vector<1x1x1x128xf32> to vector<1x128xf32>
    %cst_74 = arith.constant dense<0.000000e+00> : vector<128xf32>
    %96 = vector.multi_reduction <add>, %93, %cst_74 [0] : vector<2x128xf32> to vector<128xf32>
    %97 = vector.shape_cast %96 : vector<128xf32> to vector<1x128xf32>
    %98 = arith.addf %95, %97 : vector<1x128xf32>
    %c0_75 = arith.constant 0 : index
    %c0_76 = arith.constant 0 : index
    %c2_77 = arith.constant 2 : index
    %c0_78 = arith.constant 0 : index
    %99 = vector.load %arg4[%c0_75, %c0_76, %c2_77, %c0_78] : memref<1x3x4x128xf32, #tpu.memory_space<vmem>>, vector<1x1x1x128xf32>
    %100 = vector.shape_cast %99 : vector<1x1x1x128xf32> to vector<1x128xf32>
    %101 = vector.shape_cast %98 : vector<1x128xf32> to vector<1x1x1x128xf32>
    tpu.vector_store %arg4[%c0_75, %c0_76, %c2_77, %c0_78], %101 {strides = array<i32>} : memref<1x3x4x128xf32, #tpu.memory_space<vmem>>, vector<1x1x1x128xf32>,
    %c0_79 = arith.constant 0 : index
    %c1_80 = arith.constant 1 : index
    %c2_81 = arith.constant 2 : index
    %c0_82 = arith.constant 0 : index
    %102 = vector.load %arg4[%c0_79, %c1_80, %c2_81, %c0_82] : memref<1x3x4x128xf32, #tpu.memory_space<vmem>>, vector<1x1x1x128xf32>
    %103 = vector.shape_cast %102 : vector<1x1x1x128xf32> to vector<1x128xf32>
    %cst_83 = arith.constant dense<0.000000e+00> : vector<128xf32>
    %104 = vector.multi_reduction <add>, %88, %cst_83 [0] : vector<2x128xf32> to vector<128xf32>
    %105 = vector.shape_cast %104 : vector<128xf32> to vector<1x128xf32>
    %106 = arith.addf %103, %105 : vector<1x128xf32>
    %c0_84 = arith.constant 0 : index
    %c1_85 = arith.constant 1 : index
    %c2_86 = arith.constant 2 : index
    %c0_87 = arith.constant 0 : index
    %107 = vector.load %arg4[%c0_84, %c1_85, %c2_86, %c0_87] : memref<1x3x4x128xf32, #tpu.memory_space<vmem>>, vector<1x1x1x128xf32>
    %108 = vector.shape_cast %107 : vector<1x1x1x128xf32> to vector<1x128xf32>
    %109 = vector.shape_cast %106 : vector<1x128xf32> to vector<1x1x1x128xf32>
    tpu.vector_store %arg4[%c0_84, %c1_85, %c2_86, %c0_87], %109 {strides = array<i32>} : memref<1x3x4x128xf32, #tpu.memory_space<vmem>>, vector<1x1x1x128xf32>,
    %c0_88 = arith.constant 0 : index
    %c2_89 = arith.constant 2 : index
    %c2_90 = arith.constant 2 : index
    %c0_91 = arith.constant 0 : index
    %110 = vector.load %arg4[%c0_88, %c2_89, %c2_90, %c0_91] : memref<1x3x4x128xf32, #tpu.memory_space<vmem>>, vector<1x1x1x128xf32>
    %111 = vector.shape_cast %110 : vector<1x1x1x128xf32> to vector<1x128xf32>
    %cst_92 = arith.constant dense<0.000000e+00> : vector<128xf32>
    %112 = vector.multi_reduction <add>, %92, %cst_92 [0] : vector<2x128xf32> to vector<128xf32>
    %113 = vector.shape_cast %112 : vector<128xf32> to vector<1x128xf32>
    %114 = arith.addf %111, %113 : vector<1x128xf32>
    %c0_93 = arith.constant 0 : index
    %c2_94 = arith.constant 2 : index
    %c2_95 = arith.constant 2 : index
    %c0_96 = arith.constant 0 : index
    %115 = vector.load %arg4[%c0_93, %c2_94, %c2_95, %c0_96] : memref<1x3x4x128xf32, #tpu.memory_space<vmem>>, vector<1x1x1x128xf32>
    %116 = vector.shape_cast %115 : vector<1x1x1x128xf32> to vector<1x128xf32>
    %117 = vector.shape_cast %114 : vector<1x128xf32> to vector<1x1x1x128xf32>
    tpu.vector_store %arg4[%c0_93, %c2_94, %c2_95, %c0_96], %117 {strides = array<i32>} : memref<1x3x4x128xf32, #tpu.memory_space<vmem>>, vector<1x1x1x128xf32>,
    %118 = arith.mulf %23, %27 : vector<2x128xf32>
    %c3_i32 = arith.constant 3 : i32
    %119 = vector.broadcast %c3_i32 : i32 to vector<2x128xi32>
    %120 = arith.cmpi eq, %4, %119 : vector<2x128xi32>
    %121 = arith.extui %120 : vector<2x128xi1> to vector<2x128xi32>
    %122 = arith.sitofp %121 : vector<2x128xi32> to vector<2x128xf32>
    %123 = arith.mulf %118, %122 : vector<2x128xf32>
    %c0_97 = arith.constant 0 : index
    %c0_98 = arith.constant 0 : index
    %c3_99 = arith.constant 3 : index
    %c0_100 = arith.constant 0 : index
    %124 = vector.load %arg4[%c0_97, %c0_98, %c3_99, %c0_100] : memref<1x3x4x128xf32, #tpu.memory_space<vmem>>, vector<1x1x1x128xf32>
    %125 = vector.shape_cast %124 : vector<1x1x1x128xf32> to vector<1x128xf32>
    %cst_101 = arith.constant dense<0.000000e+00> : vector<128xf32>
    %126 = vector.multi_reduction <add>, %123, %cst_101 [0] : vector<2x128xf32> to vector<128xf32>
    %127 = vector.shape_cast %126 : vector<128xf32> to vector<1x128xf32>
    %128 = arith.addf %125, %127 : vector<1x128xf32>
    %c0_102 = arith.constant 0 : index
    %c0_103 = arith.constant 0 : index
    %c3_104 = arith.constant 3 : index
    %c0_105 = arith.constant 0 : index
    %129 = vector.load %arg4[%c0_102, %c0_103, %c3_104, %c0_105] : memref<1x3x4x128xf32, #tpu.memory_space<vmem>>, vector<1x1x1x128xf32>
    %130 = vector.shape_cast %129 : vector<1x1x1x128xf32> to vector<1x128xf32>
    %131 = vector.shape_cast %128 : vector<1x128xf32> to vector<1x1x1x128xf32>
    tpu.vector_store %arg4[%c0_102, %c0_103, %c3_104, %c0_105], %131 {strides = array<i32>} : memref<1x3x4x128xf32, #tpu.memory_space<vmem>>, vector<1x1x1x128xf32>,
    %c0_106 = arith.constant 0 : index
    %c1_107 = arith.constant 1 : index
    %c3_108 = arith.constant 3 : index
    %c0_109 = arith.constant 0 : index
    %132 = vector.load %arg4[%c0_106, %c1_107, %c3_108, %c0_109] : memref<1x3x4x128xf32, #tpu.memory_space<vmem>>, vector<1x1x1x128xf32>
    %133 = vector.shape_cast %132 : vector<1x1x1x128xf32> to vector<1x128xf32>
    %cst_110 = arith.constant dense<0.000000e+00> : vector<128xf32>
    %134 = vector.multi_reduction <add>, %118, %cst_110 [0] : vector<2x128xf32> to vector<128xf32>
    %135 = vector.shape_cast %134 : vector<128xf32> to vector<1x128xf32>
    %136 = arith.addf %133, %135 : vector<1x128xf32>
    %c0_111 = arith.constant 0 : index
    %c1_112 = arith.constant 1 : index
    %c3_113 = arith.constant 3 : index
    %c0_114 = arith.constant 0 : index
    %137 = vector.load %arg4[%c0_111, %c1_112, %c3_113, %c0_114] : memref<1x3x4x128xf32, #tpu.memory_space<vmem>>, vector<1x1x1x128xf32>
    %138 = vector.shape_cast %137 : vector<1x1x1x128xf32> to vector<1x128xf32>
    %139 = vector.shape_cast %136 : vector<1x128xf32> to vector<1x1x1x128xf32>
    tpu.vector_store %arg4[%c0_111, %c1_112, %c3_113, %c0_114], %139 {strides = array<i32>} : memref<1x3x4x128xf32, #tpu.memory_space<vmem>>, vector<1x1x1x128xf32>,
    %c0_115 = arith.constant 0 : index
    %c2_116 = arith.constant 2 : index
    %c3_117 = arith.constant 3 : index
    %c0_118 = arith.constant 0 : index
    %140 = vector.load %arg4[%c0_115, %c2_116, %c3_117, %c0_118] : memref<1x3x4x128xf32, #tpu.memory_space<vmem>>, vector<1x1x1x128xf32>
    %141 = vector.shape_cast %140 : vector<1x1x1x128xf32> to vector<1x128xf32>
    %cst_119 = arith.constant dense<0.000000e+00> : vector<128xf32>
    %142 = vector.multi_reduction <add>, %122, %cst_119 [0] : vector<2x128xf32> to vector<128xf32>
    %143 = vector.shape_cast %142 : vector<128xf32> to vector<1x128xf32>
    %144 = arith.addf %141, %143 : vector<1x128xf32>
    %c0_120 = arith.constant 0 : index
    %c2_121 = arith.constant 2 : index
    %c3_122 = arith.constant 3 : index
    %c0_123 = arith.constant 0 : index
    %145 = vector.load %arg4[%c0_120, %c2_121, %c3_122, %c0_123] : memref<1x3x4x128xf32, #tpu.memory_space<vmem>>, vector<1x1x1x128xf32>
    %146 = vector.shape_cast %145 : vector<1x1x1x128xf32> to vector<1x128xf32>
    %147 = vector.shape_cast %144 : vector<1x128xf32> to vector<1x1x1x128xf32>
    tpu.vector_store %arg4[%c0_120, %c2_121, %c3_122, %c0_123], %147 {strides = array<i32>} : memref<1x3x4x128xf32, #tpu.memory_space<vmem>>, vector<1x1x1x128xf32>,
    return
  }
  func.func @transform_0(%arg0: i32, %arg1: i32) -> (i32, i32, i32, i32) {
    %c0_i32 = arith.constant 0 : i32
    %c0_i32_0 = arith.constant 0 : i32
    %c0_i32_1 = arith.constant 0 : i32
    return %arg0, %c0_i32, %arg1, %c0_i32_0 : i32, i32, i32, i32
  }
  func.func @transform_1(%arg0: i32, %arg1: i32) -> (i32, i32, i32) {
    %c0_i32 = arith.constant 0 : i32
    %c0_i32_0 = arith.constant 0 : i32
    return %arg0, %arg1, %c0_i32 : i32, i32, i32
  }
  func.func @transform_2(%arg0: i32, %arg1: i32) -> (i32, i32, i32, i32) {
    %c0_i32 = arith.constant 0 : i32
    %c0_i32_0 = arith.constant 0 : i32
    %c0_i32_1 = arith.constant 0 : i32
    %c0_i32_2 = arith.constant 0 : i32
    return %arg0, %c0_i32, %c0_i32_0, %c0_i32_1 : i32, i32, i32, i32
  }
}

</mosaic_0001>

<llo_original>
// kernel: _multitask_forward.1
$region0: #{_multitask_forward.1}
  #allocation0 [shape = 'u32[]', space=smem, size = 0x4, offset = 0x4, fixed_abs, tag = 'smem constant byte address 0x4 - core index']
  #allocation1 [shape = 'u32[144,128]{1,0:T(1,128)}', space=vmem, size = 0x12000, scoped, tag = 'internal scratch']
  %s0 = inlined_call_operand.vmem [shape: f32[2,4,2,128], index: 0, kind: input, shape index: {}]
  %s1 = inlined_call_operand.vmem [shape: s32[2,2,128], index: 1, kind: input, shape index: {}]
  %s2 = inlined_call_operand.vmem [shape: f32[2,3,4,128], index: 2, kind: output, shape index: {}]
  %s3 = sld [smem:[#allocation0]]
  $region45: #{_multitask_forward.1} parent=0
    _
  %s5 = ssub.s32 1, %s3
  %s6 = scalar_select 0, %s5, %s3
  loop: start=0, step=1, limit=4
  $region2: #{_multitask_forward.1} parent=0 // loop_pre_header
    _
  $region3: #{_multitask_forward.1} parent=0 // loop_header
    %s8 = sphi 0, %s12
    %p9 = scmp.ge.s32.totalorder %s8, 4
    %s15 = sphi 0, %s27
    %s16 = sphi 0, %s23
    %s17 = sphi 0, %s15
    %s18 = sphi 0, %s16
    %s19 = sphi 0, %s17
    %s20 = sphi 0, %s18
    %s32 = sphi 0, %s34
    %s35 = sphi 0, %s32
    %s36 = sphi 0, %s35
    %s52 = sphi 0, %s36
    %s60 = sphi 0, %s62
    %s63 = sphi 0, %s60
    %s64 = sphi 0, %s63
    %s80 = sphi 0, %s64
    %s86 = sphi 0, %s88
    %s89 = sphi 0, %s86
    %s90 = sphi 0, %s89
    %s106 = sphi 0, %s90
  $region4: #{_multitask_forward.1} parent=0 // loop_header_branch
    %11 = sbr.rel (%p9) target = $region8
  $region5: #{_multitask_forward.1} parent=0 // loop_body
    %s13 = ssub.s32 %s8, 1
    %s14 = ssub.s32 %s8, 2
    %s21 = sadd.s32 1, %s16
    %p22 = scmp.ge.s32.totalorder %s21, 1
    %s23 = scalar_select %p22, 0, %s21
    %s24 = sadd.s32 1, %s15
    %s25 = scalar_select %p22, %s24, %s15
    %p26 = scmp.ge.s32.totalorder %s25, 2
    %s27 = scalar_select %p26, 0, %s25
    %s28 = ssub.s32 %s15, %s27
    %s29 = ssub.s32 %s16, %s23
    %s30 = sor.u32 %s28, %s29
    %p31 = scmp.eq.s32.totalorder %s30, 0
    %s33 = sadd.s32 %s32, 1
    %s34 = scalar_select %p31, %s32, %s33
    %p37 = pneg %p31
    %p38 = scmp.eq.s32.totalorder %s8, 1
    %p39 = por %p37, %p38
    %p40 = scmp.ne.s32.totalorder %s32, %s35
    %p41 = scmp.eq.s32.totalorder %s8, 0
    %p42 = por %p40, %p41
    %p43 = scmp.ne.s32.totalorder %s32, %s35
    %p44 = scmp.eq.s32.totalorder %s13, 1
    %p45 = por %p43, %p44
    %p46 = scmp.ne.s32.totalorder %s35, %s36
    %p47 = scmp.eq.s32.totalorder %s13, 0
    %p48 = por %p46, %p47
    %p49 = scmp.ne.s32.totalorder %s35, %s36
    %p50 = scmp.eq.s32.totalorder %s14, 1
    %p51 = por %p49, %p50
    %p53 = scmp.ne.s32.totalorder %s36, %s52
    %p54 = scmp.eq.s32.totalorder %s14, 0
    %p55 = por %p53, %p54
    %s56 = ssub.s32 %s15, %s27
    %s57 = ssub.s32 %s16, %s23
    %s58 = sor.u32 %s56, %s57
    %p59 = scmp.eq.s32.totalorder %s58, 0
    %s61 = sadd.s32 %s60, 1
    %s62 = scalar_select %p59, %s60, %s61
    %p65 = pneg %p59
    %p66 = scmp.eq.s32.totalorder %s8, 1
    %p67 = por %p65, %p66
    %p68 = scmp.ne.s32.totalorder %s60, %s63
    %p69 = scmp.eq.s32.totalorder %s8, 0
    %p70 = por %p68, %p69
    %p71 = scmp.ne.s32.totalorder %s60, %s63
    %p72 = scmp.eq.s32.totalorder %s13, 1
    %p73 = por %p71, %p72
    %p74 = scmp.ne.s32.totalorder %s63, %s64
    %p75 = scmp.eq.s32.totalorder %s13, 0
    %p76 = por %p74, %p75
    %p77 = scmp.ne.s32.totalorder %s63, %s64
    %p78 = scmp.eq.s32.totalorder %s14, 1
    %p79 = por %p77, %p78
    %p81 = scmp.ne.s32.totalorder %s64, %s80
    %p82 = scmp.eq.s32.totalorder %s14, 0
    %p83 = por %p81, %p82
    %s84 = ssub.s32 %s15, %s27
    %p85 = scmp.eq.s32.totalorder %s84, 0
    %s87 = sadd.s32 %s86, 1
    %s88 = scalar_select %p85, %s86, %s87
    %p91 = pneg %p85
    %p92 = scmp.eq.s32.totalorder %s8, 1
    %p93 = por %p91, %p92
    %p94 = scmp.ne.s32.totalorder %s86, %s89
    %p95 = scmp.eq.s32.totalorder %s8, 0
    %p96 = por %p94, %p95
    %p97 = scmp.ne.s32.totalorder %s86, %s89
    %p98 = scmp.eq.s32.totalorder %s13, 1
    %p99 = por %p97, %p98
    %p100 = scmp.ne.s32.totalorder %s89, %s90
    %p101 = scmp.eq.s32.totalorder %s13, 0
    %p102 = por %p100, %p101
    %p103 = scmp.ne.s32.totalorder %s89, %s90
    %p104 = scmp.eq.s32.totalorder %s14, 1
    %p105 = por %p103, %p104
    %p107 = scmp.ne.s32.totalorder %s90, %s106
    %p108 = scmp.eq.s32.totalorder %s14, 0
    %p109 = por %p107, %p108
    %p110 = scmp.le.s32.totalorder 1, %s8
    %p111 = scmp.lt.s32.totalorder %s8, 3
    %p112 = pnand %p110, %p111
    %p113 = pneg %p112
    // Predicated region
    $region9: #{_multitask_forward.1} parent=5 // pred_check
      _
    $region10: #{_multitask_forward.1} parent=5 // pred_check_branch
      %115 = sbr.rel (%p112) target = $region12
    $region11: #{_multitask_forward.1} parent=5 // pred_region
      %s116 = ssub.s32 %s8, 1
    $region12: #{_multitask_forward.1} parent=5 // pred_fallthru
      _
    %p117 = scmp.lt.s32.totalorder %s8, 2
    // Predicated region
    $region13: #{_multitask_forward.1} parent=5 // pred_check
      %p118 = pneg %p117
    $region14: #{_multitask_forward.1} parent=5 // pred_check_branch
      %120 = sbr.rel (%p118) target = $region16
    $region15: #{_multitask_forward.1} parent=5 // pred_region
      // Predicated region
      $region17: #{_multitask_forward.1} parent=15 // pred_check
        %p121 = pneg %p42
      $region18: #{_multitask_forward.1} parent=15 // pred_check_branch
        %123 = sbr.rel (%p121) target = $region20
      $region19: #{_multitask_forward.1} parent=15 // pred_region
        %p124 = scmp.lt.s32.totalorder %s15, 1
        %s125 = scalar_select %p124, %s15, 1
        %p126 = scmp.lt.s32.totalorder %s16, 0
        %s127 = scalar_select %p126, %s16, 0
        %s128 = smul.addr %s125, 4
        %s129 = sadd.s32 %s127, %s128
        %s130 = smul.addr %s129, 2
        %s131 = scalar_lea.vmem %s0, %s130
      $region20: #{_multitask_forward.1} parent=15 // pred_fallthru
        _
      // Predicated region
      $region21: #{_multitask_forward.1} parent=15 // pred_check
        %p132 = pneg %p70
      $region22: #{_multitask_forward.1} parent=15 // pred_check_branch
        %134 = sbr.rel (%p132) target = $region24
      $region23: #{_multitask_forward.1} parent=15 // pred_region
        %p135 = scmp.lt.s32.totalorder %s15, 1
        %s136 = scalar_select %p135, %s15, 1
        %p137 = scmp.lt.s32.totalorder %s16, 0
        %s138 = scalar_select %p137, %s16, 0
        %s139 = sadd.s32 %s138, %s136
        %s140 = smul.addr %s139, 2
        %s141 = scalar_lea.vmem %s1, %s140
      $region24: #{_multitask_forward.1} parent=15 // pred_fallthru
        _
    $region16: #{_multitask_forward.1} parent=5 // pred_fallthru
      _
    %p142 = scmp.le.s32.totalorder 1, %s8
    %p143 = scmp.lt.s32.totalorder %s8, 3
    %p144 = pnand %p142, %p143
    %p145 = pneg %p144
    // Predicated region
    $region25: #{_multitask_forward.1} parent=5 // pred_check
      _
    $region26: #{_multitask_forward.1} parent=5 // pred_check_branch
      %147 = sbr.rel (%p144) target = $region28
    $region27: #{_multitask_forward.1} parent=5 // pred_region
      %s148 = ssub.s32 %s8, 1
      %p149 = scmp.lt.s32.totalorder %s17, 1
      %s150 = scalar_select %p149, %s17, 1
      %p151 = scmp.lt.s32.totalorder %s18, 0
      %s152 = scalar_select %p151, %s18, 0
      %s153 = smul.addr %s150, 4
      %s154 = sadd.s32 %s152, %s153
      %s155 = smul.addr %s154, 2
      %s156 = scalar_lea.vmem %s0, %s155
      %p157 = pneg %p48
      %p158 = pneg %p45
      %p159 = scmp.lt.s32.totalorder %s17, 1
      %s160 = scalar_select %p159, %s17, 1
      %p161 = scmp.lt.s32.totalorder %s18, 0
      %s162 = scalar_select %p161, %s18, 0
      %s163 = sadd.s32 %s162, %s160
      %s164 = smul.addr %s163, 2
      %s165 = scalar_lea.vmem %s1, %s164
      %p166 = pneg %p76
      %p167 = pneg %p73
      %p168 = pneg %p102
      %p169 = pneg %p99
      %p170 = scmp.lt.s32.totalorder %s17, 1
      %s171 = scalar_select %p170, %s17, 1
      %s172 = smul.addr %s171, 3
      %s173 = smul.addr %s172, 4
      %s174 = scalar_lea.vmem %s2, %s173
      %p175 = scmp.lt.s32.totalorder %s17, 1
      %s176 = scalar_select %p175, %s17, 1
      %p177 = scmp.lt.s32.totalorder %s18, 0
      %s178 = scalar_select %p177, %s18, 0
      %s179 = smul.addr %s176, 4
      %s180 = sadd.s32 %s178, %s179
      %s181 = smul.addr %s180, 2
      %s182 = scalar_lea.vmem %s0, %s181
      %p183 = scmp.lt.s32.totalorder %s17, 1
      %s184 = scalar_select %p183, %s17, 1
      %p185 = scmp.lt.s32.totalorder %s18, 0
      %s186 = scalar_select %p185, %s18, 0
      %s187 = sadd.s32 %s186, %s184
      %s188 = smul.addr %s187, 2
      %s189 = scalar_lea.vmem %s1, %s188
      %p190 = scmp.lt.s32.totalorder %s17, 1
      %s191 = scalar_select %p190, %s17, 1
      %s192 = smul.addr %s191, 3
      %s193 = smul.addr %s192, 4
      %s194 = scalar_lea.vmem %s2, %s193
      %p195 = scmp.eq.s32.totalorder %s18, 0
      // Predicated region
      $region29: #{_multitask_forward.1} parent=27 // pred_check
        %p196 = pneg %p195
      $region30: #{_multitask_forward.1} parent=27 // pred_check_branch
        %198 = sbr.rel (%p196) target = $region32
      $region31: #{_multitask_forward.1} parent=27 // pred_region
        %199 = vst [vmem:[%s194] sm:$0xf] 0.0
        %200 = vst [vmem:[%s194 + $0x4] sm:$0xf] 0.0
        %201 = vst [vmem:[%s194 + $0x8] sm:$0xf] 0.0
      $region32: #{_multitask_forward.1} parent=27 // pred_fallthru
        _
      %v202 = vld [vmem:[%s189] sm:$0x3]
      %v203 = vld [vmem:[%s182] sm:$0x3]
      %s204 = scalar_lea.vmem %s182, 2
      %v205 = vld [vmem:[%s204] sm:$0x3]
      %s206 = scalar_lea.vmem %s182, 4
      %v207 = vld [vmem:[%s206] sm:$0x3]
      %s208 = scalar_lea.vmem %s182, 6
      %v209 = vld [vmem:[%s208] sm:$0x3]
      %v210 = vmax.f32 %v203, %v205
      %v211 = vmax.f32 %v210, %v207
      %v212 = vmax.f32 %v211, %v209
      %v213 = vsub.f32 %v203, %v212
      %v214 = vmul.f32 %v213, 1.442695
      %v215 = vpow.pop %v214
      %v216 = vsub.f32 %v205, %v212
      %v217 = vmul.f32 %v216, 1.442695
      %v218 = vpow.pop %v217
      %v219 = vsub.f32 %v207, %v212
      %v220 = vmul.f32 %v219, 1.442695
      %v221 = vpow.pop %v220
      %v222 = vsub.f32 %v209, %v212
      %v223 = vmul.f32 %v222, 1.442695
      %v224 = vpow.pop %v223
      %v225 = vadd.f32 %v215, %v218
      %v226 = vadd.f32 %v225, %v221
      %v227 = vadd.f32 %v226, %v224
      %v228 = vrcp.pop %v227
      %v229 = vmul.f32 %v215, %v228
      %vm230 = vcmp.eq.s32.totalorder %v202, 0
      %v231 = vsel %vm230, 1, 0
      %v232 = vcvt.s32.f32 %v231
      %v233 = vmul.f32 %v229, %v232
      %v234 = vld [vmem:[%s194] sm:$0x1]
      %vm235 = vcmask 1041408
      %v236 = vsel %vm235, %v233, 0.0
      %v237 = vrot.slane %v236, 4
      %v238 = vadd.f32 %v236, %v237
      %v239 = vrot.slane %v238, 2
      %v240 = vadd.f32 %v238, %v239
      %v241 = vrot.slane %v240, 1
      %v242 = vadd.f32 %v240, %v241
      %v243 = vadd.f32 %v234, %v242
      %244 = vst [vmem:[%s194] sm:$0x1] %v243
      %s245 = scalar_lea.vmem %s194, 4
      %v246 = vld [vmem:[%s245] sm:$0x1]
      %v247 = vsel %vm235, %v229, 0.0
      %v248 = vrot.slane %v247, 4
      %v249 = vadd.f32 %v247, %v248
      %v250 = vrot.slane %v249, 2
      %v251 = vadd.f32 %v249, %v250
      %v252 = vrot.slane %v251, 1
      %v253 = vadd.f32 %v251, %v252
      %v254 = vadd.f32 %v246, %v253
      %255 = vst [vmem:[%s245] sm:$0x1] %v254
      %s256 = scalar_lea.vmem %s194, 8
      %v257 = vld [vmem:[%s256] sm:$0x1]
      %v258 = vsel %vm235, %v232, 0.0
      %v259 = vrot.slane %v258, 4
      %v260 = vadd.f32 %v258, %v259
      %v261 = vrot.slane %v260, 2
      %v262 = vadd.f32 %v260, %v261
      %v263 = vrot.slane %v262, 1
      %v264 = vadd.f32 %v262, %v263
      %v265 = vadd.f32 %v257, %v264
      %266 = vst [vmem:[%s256] sm:$0x1] %v265
      %v267 = vmul.f32 %v218, %v228
      %vm268 = vcmp.eq.s32.totalorder %v202, 1
      %v269 = vsel %vm268, 1, 0
      %v270 = vcvt.s32.f32 %v269
      %v271 = vmul.f32 %v267, %v270
      %v272 = vld [vmem:[%s194 + $0x1] sm:$0x1]
      %v273 = vsel %vm235, %v271, 0.0
      %v274 = vrot.slane %v273, 4
      %v275 = vadd.f32 %v273, %v274
      %v276 = vrot.slane %v275, 2
      %v277 = vadd.f32 %v275, %v276
      %v278 = vrot.slane %v277, 1
      %v279 = vadd.f32 %v277, %v278
      %v280 = vadd.f32 %v272, %v279
      %281 = vst [vmem:[%s194 + $0x1] sm:$0x1] %v280
      %v282 = vld [vmem:[%s245 + $0x1] sm:$0x1]
      %v283 = vsel %vm235, %v267, 0.0
      %v284 = vrot.slane %v283, 4
      %v285 = vadd.f32 %v283, %v284
      %v286 = vrot.slane %v285, 2
      %v287 = vadd.f32 %v285, %v286
      %v288 = vrot.slane %v287, 1
      %v289 = vadd.f32 %v287, %v288
      %v290 = vadd.f32 %v282, %v289
      %291 = vst [vmem:[%s245 + $0x1] sm:$0x1] %v290
      %v292 = vld [vmem:[%s256 + $0x1] sm:$0x1]
      %v293 = vsel %vm235, %v270, 0.0
      %v294 = vrot.slane %v293, 4
      %v295 = vadd.f32 %v293, %v294
      %v296 = vrot.slane %v295, 2
      %v297 = vadd.f32 %v295, %v296
      %v298 = vrot.slane %v297, 1
      %v299 = vadd.f32 %v297, %v298
      %v300 = vadd.f32 %v292, %v299
      %301 = vst [vmem:[%s256 + $0x1] sm:$0x1] %v300
      %v302 = vmul.f32 %v221, %v228
      %vm303 = vcmp.eq.s32.totalorder %v202, 2
      %v304 = vsel %vm303, 1, 0
      %v305 = vcvt.s32.f32 %v304
      %v306 = vmul.f32 %v302, %v305
      %v307 = vld [vmem:[%s194 + $0x2] sm:$0x1]
      %v308 = vsel %vm235, %v306, 0.0
      %v309 = vrot.slane %v308, 4
      %v310 = vadd.f32 %v308, %v309
      %v311 = vrot.slane %v310, 2
      %v312 = vadd.f32 %v310, %v311
      %v313 = vrot.slane %v312, 1
      %v314 = vadd.f32 %v312, %v313
      %v315 = vadd.f32 %v307, %v314
      %316 = vst [vmem:[%s194 + $0x2] sm:$0x1] %v315
      %v317 = vld [vmem:[%s245 + $0x2] sm:$0x1]
      %v318 = vsel %vm235, %v302, 0.0
      %v319 = vrot.slane %v318, 4
      %v320 = vadd.f32 %v318, %v319
      %v321 = vrot.slane %v320, 2
      %v322 = vadd.f32 %v320, %v321
      %v323 = vrot.slane %v322, 1
      %v324 = vadd.f32 %v322, %v323
      %v325 = vadd.f32 %v317, %v324
      %326 = vst [vmem:[%s245 + $0x2] sm:$0x1] %v325
      %v327 = vld [vmem:[%s256 + $0x2] sm:$0x1]
      %v328 = vsel %vm235, %v305, 0.0
      %v329 = vrot.slane %v328, 4
      %v330 = vadd.f32 %v328, %v329
      %v331 = vrot.slane %v330, 2
      %v332 = vadd.f32 %v330, %v331
      %v333 = vrot.slane %v332, 1
      %v334 = vadd.f32 %v332, %v333
      %v335 = vadd.f32 %v327, %v334
      %336 = vst [vmem:[%s256 + $0x2] sm:$0x1] %v335
      %v337 = vmul.f32 %v224, %v228
      %vm338 = vcmp.eq.s32.totalorder %v202, 3
      %v339 = vsel %vm338, 1, 0
      %v340 = vcvt.s32.f32 %v339
      %v341 = vmul.f32 %v337, %v340
      %v342 = vld [vmem:[%s194 + $0x3] sm:$0x1]
      %v343 = vsel %vm235, %v341, 0.0
      %v344 = vrot.slane %v343, 4
      %v345 = vadd.f32 %v343, %v344
      %v346 = vrot.slane %v345, 2
      %v347 = vadd.f32 %v345, %v346
      %v348 = vrot.slane %v347, 1
      %v349 = vadd.f32 %v347, %v348
      %v350 = vadd.f32 %v342, %v349
      %351 = vst [vmem:[%s194 + $0x3] sm:$0x1] %v350
      %v352 = vld [vmem:[%s245 + $0x3] sm:$0x1]
      %v353 = vsel %vm235, %v337, 0.0
      %v354 = vrot.slane %v353, 4
      %v355 = vadd.f32 %v353, %v354
      %v356 = vrot.slane %v355, 2
      %v357 = vadd.f32 %v355, %v356
      %v358 = vrot.slane %v357, 1
      %v359 = vadd.f32 %v357, %v358
      %v360 = vadd.f32 %v352, %v359
      %361 = vst [vmem:[%s245 + $0x3] sm:$0x1] %v360
      %v362 = vld [vmem:[%s256 + $0x3] sm:$0x1]
      %v363 = vsel %vm235, %v340, 0.0
      %v364 = vrot.slane %v363, 4
      %v365 = vadd.f32 %v363, %v364
      %v366 = vrot.slane %v365, 2
      %v367 = vadd.f32 %v365, %v366
      %v368 = vrot.slane %v367, 1
      %v369 = vadd.f32 %v367, %v368
      %v370 = vadd.f32 %v362, %v369
      %371 = vst [vmem:[%s256 + $0x3] sm:$0x1] %v370
      %p372 = scmp.lt.s32.totalorder %s17, 1
      %s373 = scalar_select %p372, %s17, 1
      %s374 = smul.addr %s373, 3
      %s375 = smul.addr %s374, 4
      %s376 = scalar_lea.vmem %s2, %s375
      // Predicated region
      $region33: #{_multitask_forward.1} parent=27 // pred_check
        %p377 = pneg %p99
      $region34: #{_multitask_forward.1} parent=27 // pred_check_branch
        %379 = sbr.rel (%p377) target = $region36
      $region35: #{_multitask_forward.1} parent=27 // pred_region
        _
      $region36: #{_multitask_forward.1} parent=27 // pred_fallthru
        _
    $region28: #{_multitask_forward.1} parent=5 // pred_fallthru
      _
    %p380 = scmp.le.s32.totalorder 2, %s8
    // Predicated region
    $region37: #{_multitask_forward.1} parent=5 // pred_check
      %p381 = pneg %p380
    $region38: #{_multitask_forward.1} parent=5 // pred_check_branch
      %383 = sbr.rel (%p381) target = $region40
    $region39: #{_multitask_forward.1} parent=5 // pred_region
      %s384 = ssub.s32 %s8, 2
      // Predicated region
      $region41: #{_multitask_forward.1} parent=39 // pred_check
        %p385 = pneg %p105
      $region42: #{_multitask_forward.1} parent=39 // pred_check_branch
        %387 = sbr.rel (%p385) target = $region44
      $region43: #{_multitask_forward.1} parent=39 // pred_region
        %p388 = scmp.lt.s32.totalorder %s19, 1
        %s389 = scalar_select %p388, %s19, 1
        %s390 = smul.addr %s389, 3
        %s391 = smul.addr %s390, 4
        %s392 = scalar_lea.vmem %s2, %s391
      $region44: #{_multitask_forward.1} parent=39 // pred_fallthru
        _
    $region40: #{_multitask_forward.1} parent=5 // pred_fallthru
      _
  $region6: #{_multitask_forward.1} parent=0 // loop_footer
    %s12 = sadd.s32 1, %s8
  $region7: #{_multitask_forward.1} parent=0 // loop_footer_branch
    %7 = sbr.rel target = $region3
  $region8: #{_multitask_forward.1} parent=0 // loop_exit
    _

</llo_original>
